<compile_context>
chip_gen: v5e
topology: v5e:2x2
jax: 0.10.0
libtpu: 0.0.40
codegen_flags: <defaults>
</compile_context>

<pallas_src>
import functools
import math

import jax
import jax.numpy as jnp
from jax.experimental import pallas as pl
from jax.experimental.pallas import tpu as pltpu

_LANES = 128
_MAX_TILE_ROWS = 512          # 512x128 f32 = 256 KiB per buffer


def _round_up(x, m):
    return ((x + m - 1) // m) * m


def _edge_mask_kernel(src_ref, dst_ref, rand_ref, mask_ref, upd_ref,
                      *, threshold, std):
    """Per-tile elementwise work on a lane-dense (tile_rows, 128) edge slab.

    src_ref / dst_ref : (T, 128) int32   edge endpoints (padded lanes = -1)
    rand_ref          : (T, 128) float32 standard-normal draws
    mask_ref          : (T, 128) float32 out: randn*std on attacked edges, 1.0 else
    upd_ref           : (T, 128) int8    out: 1 where the edge touches a new node
    """
    src = src_ref[...]
    dst = dst_ref[...]
    # Edge is attackable iff either endpoint is one of the newly added nodes,
    # i.e. id >= num_nodes - added_node_num.
    upd = jnp.logical_or(src >= threshold, dst >= threshold)
    mask_ref[...] = jnp.where(upd, rand_ref[...] * jnp.float32(std),
                              jnp.float32(1.0))
    upd_ref[...] = upd.astype(jnp.int8)


def construct_masks_pallas(edge_index, rand_edge, rand_feat,
                           num_nodes, added_node_num):
    """Pallas equivalent of AttackBase.__construct_mask__ / __set_masks__.

    Returns (edge_mask (E,), updated_indicator (E,) int32, updated_count,
             node_feat_mask (A, F)).
    """
    E = int(edge_index.shape[1])
    threshold = int(num_nodes - added_node_num)
    # torch.nn.init.calculate_gain('relu') * sqrt(2 / (2 * N))
    std = math.sqrt(2.0) * math.sqrt(2.0 / (2.0 * num_nodes))

    # ---- lane-dense layout + tiling ------------------------------------
    rows = max(pl.cdiv(E, _LANES), 1)
    if rows <= _MAX_TILE_ROWS:
        tile_rows = _round_up(rows, 32)      # 32: int8 native sublane tile
        rows_pad = tile_rows
    else:
        tile_rows = _MAX_TILE_ROWS
        rows_pad = _round_up(rows, tile_rows)
    e_pad = rows_pad * _LANES
    num_tiles = rows_pad // tile_rows
    pad = e_pad - E

    src = edge_index[0].astype(jnp.int32).reshape(-1)
    dst = edge_index[1].astype(jnp.int32).reshape(-1)
    rnd = rand_edge.astype(jnp.float32).reshape(-1)[:E]

    # Padded lanes: endpoints = -1 (< threshold, since threshold >= 0) so they
    # are never flagged as attacked and never inflate the count.
    src_p = jnp.pad(src, (0, pad), constant_values=-1).reshape(rows_pad, _LANES)
    dst_p = jnp.pad(dst, (0, pad), constant_values=-1).reshape(rows_pad, _LANES)
    rnd_p = jnp.pad(rnd, (0, pad)).reshape(rows_pad, _LANES)

    kernel = functools.partial(_edge_mask_kernel, threshold=threshold, std=std)
    tile_spec = pl.BlockSpec((tile_rows, _LANES), lambda i: (i, 0))

    edge_mask_2d, updated_2d = pl.pallas_call(
        kernel,
        grid=(num_tiles,),
        in_specs=[tile_spec, tile_spec, tile_spec],
        out_specs=(pl.BlockSpec((tile_rows, _LANES), lambda i: (i, 0)),
                   pl.BlockSpec((tile_rows, _LANES), lambda i: (i, 0))),
        out_shape=(jax.ShapeDtypeStruct((rows_pad, _LANES), jnp.float32),
                   jax.ShapeDtypeStruct((rows_pad, _LANES), jnp.int8)),
        compiler_params=pltpu.CompilerParams(
            dimension_semantics=("parallel",)),
    )(src_p, dst_p, rnd_p)

    edge_mask = edge_mask_2d.reshape(-1)[:E]
    updated = updated_2d.reshape(-1)[:E].astype(jnp.int32)
    updated_count = jnp.sum(updated)                 # tiny XLA reduce
    # node_feat_mask = randn((A, F)) * 0.1 -- trivial scale, left to XLA.
    node_feat_mask = rand_feat.astype(jnp.float32) * jnp.float32(0.1)
    return edge_mask, updated, updated_count, node_feat_mask


class AttackBaseJax:
    """JAX/Pallas port of AttackBase (attack-graph mask construction)."""

    def __init__(self, new_node_num=0, attack_graph=True, mask_features=False,
                 mask_structure=True, indirect_level=0):
        self.added_node_num = new_node_num
        self.attack_graph = attack_graph
        self.mask_features = mask_features
        self.mask_structure = mask_structure
        self.indirect_level = indirect_level
        self.num_edges = None
        self.num_nodes = None
        self.edge_mask = None
        self.node_feat_mask = None
        self.updated_edge_indicator = None
        self.updated_edge_count = None
        # TODO(synk): MessagePassing module hooks (__explain__/__edge_mask__)
        # and nn.Parameter registration have no Pallas equivalent; masks are
        # returned as plain arrays instead.

    def forward(self, x, edge_index):
        # Exact semantics of AttackBase.forward: record shape bookkeeping.
        self.num_edges = edge_index.shape[1]
        self.num_nodes = x.shape[0]
        return None

    def set_masks(self, x, edge_index, rand_edge, rand_feat):
        # Hot-path compute of __set_masks__/__construct_mask__ in Pallas.
        (self.edge_mask, self.updated_edge_indicator,
         self.updated_edge_count, self.node_feat_mask) = construct_masks_pallas(
            edge_index, rand_edge, rand_feat,
            self.num_nodes, self.added_node_num)
        return self.edge_mask, self.node_feat_mask

    # TODO(synk): control_sparsity's data-dependent sort + greedy membership
    # loop (torch.sort + per-index tests) is host-side control flow with no
    # clean Pallas mapping and is not translated.


if __name__ == "__main__":
    key = jax.random.PRNGKey(0)
    N, F, A, E = 10, 8, 2, 32   # nodes, feature dim, newly added nodes, edges
    k_x, k_src, k_dst, k_re, k_rf = jax.random.split(key, 5)

    x = jax.random.normal(k_x, (N, F), dtype=jnp.float32)
    src = jax.random.randint(k_src, (1, E), 0, N, dtype=jnp.int32)
    dst = jax.random.randint(k_dst, (1, E), 0, N, dtype=jnp.int32)
    edge_index = jnp.concatenate([src, dst], axis=0)           # (2, E)

    rand_edge = jax.random.normal(k_re, (E,), dtype=jnp.float32)
    rand_feat = jax.random.normal(k_rf, (A, F), dtype=jnp.float32)

    attack = AttackBaseJax(new_node_num=A)
    attack.forward(x, edge_index)                              # records shapes
    edge_mask, feat_mask = attack.set_masks(x, edge_index, rand_edge, rand_feat)
    jax.block_until_ready((edge_mask, feat_mask,
                           attack.updated_edge_indicator,
                           attack.updated_edge_count))

    # Pure-JAX reference for the kernel math.
    threshold = N - A
    std = math.sqrt(2.0) * math.sqrt(2.0 / (2.0 * N))
    ref_upd = (edge_index[0] >= threshold) | (edge_index[1] >= threshold)
    ref_mask = jnp.where(ref_upd, rand_edge * std, 1.0)
    ref_feat = rand_feat * 0.1

    assert attack.num_nodes == N and attack.num_edges == E
    assert edge_mask.shape == (E,)
    assert jnp.allclose(edge_mask, ref_mask, atol=1e-6)
    assert jnp.array_equal(attack.updated_edge_indicator,
                           ref_upd.astype(jnp.int32))
    assert int(attack.updated_edge_count) == int(ref_upd.sum())
    assert jnp.allclose(feat_mask, ref_feat, atol=1e-6)

    print("KERNEL_OK")
</pallas_src>

<mosaic_0001>
module attributes {stable_mosaic.version = 11 : i64} {
  func.func @_edge_mask_kernel(%arg0: i32, %arg1: memref<32x128xi32, #tpu.memory_space<vmem>>, %arg2: memref<32x128xi32, #tpu.memory_space<vmem>>, %arg3: memref<32x128xf32, #tpu.memory_space<vmem>>, %arg4: memref<32x128xf32, #tpu.memory_space<vmem>>, %arg5: memref<32x128xi8, #tpu.memory_space<vmem>>) attributes {dimension_semantics = [#tpu.dimension_semantics<parallel>], iteration_bounds = array<i64: 1>, scalar_prefetch = 0 : i64, scratch_operands = 0 : i64, tpu.core_type = #tpu.core_type<tc>, window_params = [{transform_indices = @transform_0, window_bounds = array<i64: 32, 128>}, {transform_indices = @transform_1, window_bounds = array<i64: 32, 128>}, {transform_indices = @transform_2, window_bounds = array<i64: 32, 128>}, {transform_indices = @transform_3, window_bounds = array<i64: 32, 128>}, {transform_indices = @transform_4, window_bounds = array<i64: 32, 128>}]} {
    %c0 = arith.constant 0 : index
    %c0_0 = arith.constant 0 : index
    %0 = vector.load %arg1[%c0, %c0_0] : memref<32x128xi32, #tpu.memory_space<vmem>>, vector<32x128xi32>
    %c0_1 = arith.constant 0 : index
    %c0_2 = arith.constant 0 : index
    %1 = vector.load %arg2[%c0_1, %c0_2] : memref<32x128xi32, #tpu.memory_space<vmem>>, vector<32x128xi32>
    %c8_i32 = arith.constant 8 : i32
    %2 = vector.broadcast %c8_i32 : i32 to vector<32x128xi32>
    %3 = arith.cmpi sge, %0, %2 : vector<32x128xi32>
    %c8_i32_3 = arith.constant 8 : i32
    %4 = vector.broadcast %c8_i32_3 : i32 to vector<32x128xi32>
    %5 = arith.cmpi sge, %1, %4 : vector<32x128xi32>
    %6 = arith.ori %3, %5 : vector<32x128xi1>
    %c0_4 = arith.constant 0 : index
    %c0_5 = arith.constant 0 : index
    %7 = vector.load %arg3[%c0_4, %c0_5] : memref<32x128xf32, #tpu.memory_space<vmem>>, vector<32x128xf32>
    %cst = arith.constant 0.44721359 : f32
    %8 = vector.broadcast %cst : f32 to vector<32x128xf32>
    %9 = arith.mulf %7, %8 : vector<32x128xf32>
    %cst_6 = arith.constant 1.000000e+00 : f32
    %10 = vector.broadcast %cst_6 : f32 to vector<32x128xf32>
    %11 = arith.select %6, %9, %10 : vector<32x128xi1>, vector<32x128xf32>
    %c0_7 = arith.constant 0 : index
    %c0_8 = arith.constant 0 : index
    %12 = vector.load %arg4[%c0_7, %c0_8] : memref<32x128xf32, #tpu.memory_space<vmem>>, vector<32x128xf32>
    tpu.vector_store %arg4[%c0_7, %c0_8], %11 {strides = array<i32>} : memref<32x128xf32, #tpu.memory_space<vmem>>, vector<32x128xf32>,
    %13 = arith.extui %6 : vector<32x128xi1> to vector<32x128xi8>
    %c0_9 = arith.constant 0 : index
    %c0_10 = arith.constant 0 : index
    %14 = vector.load %arg5[%c0_9, %c0_10] : memref<32x128xi8, #tpu.memory_space<vmem>>, vector<32x128xi8>
    tpu.vector_store %arg5[%c0_9, %c0_10], %13 {strides = array<i32>} : memref<32x128xi8, #tpu.memory_space<vmem>>, vector<32x128xi8>,
    return
  }
  func.func @transform_0(%arg0: i32) -> (i32, i32) {
    %c0_i32 = arith.constant 0 : i32
    %c0_i32_0 = arith.constant 0 : i32
    return %arg0, %c0_i32 : i32, i32
  }
  func.func @transform_1(%arg0: i32) -> (i32, i32) {
    %c0_i32 = arith.constant 0 : i32
    %c0_i32_0 = arith.constant 0 : i32
    return %arg0, %c0_i32 : i32, i32
  }
  func.func @transform_2(%arg0: i32) -> (i32, i32) {
    %c0_i32 = arith.constant 0 : i32
    %c0_i32_0 = arith.constant 0 : i32
    return %arg0, %c0_i32 : i32, i32
  }
  func.func @transform_3(%arg0: i32) -> (i32, i32) {
    %c0_i32 = arith.constant 0 : i32
    %c0_i32_0 = arith.constant 0 : i32
    return %arg0, %c0_i32 : i32, i32
  }
  func.func @transform_4(%arg0: i32) -> (i32, i32) {
    %c0_i32 = arith.constant 0 : i32
    %c0_i32_0 = arith.constant 0 : i32
    return %arg0, %c0_i32 : i32, i32
  }
}

</mosaic_0001>

<llo_original>
// kernel: tpu_custom_call.1
$region0: #{tpu_custom_call.1}
  #allocation0 [shape = 'u32[]', space=smem, size = 0x4, offset = 0x4, fixed_abs, tag = 'smem constant byte address 0x4 - core index']
  #allocation1 [shape = 'u32[72,128]{1,0:T(1,128)}', space=vmem, size = 0x9000, scoped, tag = 'internal scratch']
  %s0 = inlined_call_operand.hbm [shape: s32[32,128], index: 0, kind: input, shape index: {}]
  %s1 = inlined_call_operand.hbm [shape: s32[32,128], index: 1, kind: input, shape index: {}]
  %s2 = inlined_call_operand.hbm [shape: f32[32,128], index: 2, kind: input, shape index: {}]
  %s3 = inlined_call_operand.hbm [shape: f32[32,128], index: 3, kind: output, shape index: {0}]
  %s4 = inlined_call_operand.hbm [shape: s8[32,128], index: 4, kind: output, shape index: {1}]
  %5 = xla_tuple %s3, %s4
  %s6 = sld [smem:[#allocation0]]
  $region42: #{tpu_custom_call.1} parent=0
    _
  %s8 = ssub.s32 1, %s6
  %s9 = scalar_select 0, %s8, %s6
  $region1: #{tpu_custom_call.1} parent=0
    #allocation2 [shape = 'u8[16384]{0}', space=vmem, size = 0x4000, scoped, tag = 'input window, operand 0, single buffered']
    #allocation3 [shape = 's32[1]{0}', space=sflag, size = 0x4, scoped, tag = 'scoped memory for tpu_custom_call.1']
    #allocation4 [shape = 's32[1]{0}', space=sflag, size = 0x4, scoped, tag = 'scoped memory for tpu_custom_call.1']
    #allocation5 [shape = 'u8[16384]{0}', space=vmem, size = 0x4000, scoped, tag = 'input window, operand 1, single buffered']
    #allocation6 [shape = 's32[1]{0}', space=sflag, size = 0x4, scoped, tag = 'scoped memory for tpu_custom_call.1']
    #allocation7 [shape = 'u8[16384]{0}', space=vmem, size = 0x4000, scoped, tag = 'input window, operand 2, single buffered']
    #allocation8 [shape = 'u8[16384]{0}', space=vmem, size = 0x4000, scoped, tag = 'output window, operand 0, single buffered']
    #allocation9 [shape = 'u8[4096]{0}', space=vmem, size = 0x1000, scoped, tag = 'output window, operand 1, single buffered']
    #allocation10 [shape = 's32[1]{0}', space=sflag, size = 0x4, scoped, tag = 'scoped memory for tpu_custom_call.1']
    %10 = vsyncpa [#allocation3], 0
    %11 = vsyncpa [#allocation6], 0
    %12 = vsyncpa [#allocation4], 0
    %13 = vsyncpa [#allocation10], 0
    // Predicated region
    $region2: #{tpu_custom_call.1} parent=1 // pred_check
      _
    $region3: #{tpu_custom_call.1} parent=1 // pred_check_branch
      %15 = sbr.rel (0) target = $region5
    $region4: #{tpu_custom_call.1} parent=1 // pred_region
      %17 = vsyncadd [#allocation3], 0
      %s18 = sshll.u32 %s0, 4
      %s19 = int_to_ptr.hbm [resolvable:$true] %s18
      %s20 = sshll.u32 [#allocation2], 4
      %s21 = int_to_ptr.vmem [resolvable:$true] %s20
      %26 = dma.hbm_to_vmem [thread:$0]  %s19, 512, %s21, [#allocation3], 128, 128, 8
    $region5: #{tpu_custom_call.1} parent=1 // pred_fallthru
      _
    // Predicated region
    $region6: #{tpu_custom_call.1} parent=1 // pred_check
      _
    $region7: #{tpu_custom_call.1} parent=1 // pred_check_branch
      %28 = sbr.rel (0) target = $region9
    $region8: #{tpu_custom_call.1} parent=1 // pred_region
      %30 = vsyncadd [#allocation6], 0
      %s31 = sshll.u32 %s1, 4
      %s32 = int_to_ptr.hbm [resolvable:$true] %s31
      %s33 = sshll.u32 [#allocation5], 4
      %s34 = int_to_ptr.vmem [resolvable:$true] %s33
      %39 = dma.hbm_to_vmem [thread:$0]  %s32, 512, %s34, [#allocation6], 128, 128, 8
    $region9: #{tpu_custom_call.1} parent=1 // pred_fallthru
      _
    // Predicated region
    $region10: #{tpu_custom_call.1} parent=1 // pred_check
      _
    $region11: #{tpu_custom_call.1} parent=1 // pred_check_branch
      %41 = sbr.rel (0) target = $region13
    $region12: #{tpu_custom_call.1} parent=1 // pred_region
      %43 = vsyncadd [#allocation6], 0
      %s44 = sshll.u32 %s2, 4
      %s45 = int_to_ptr.hbm [resolvable:$true] %s44
      %s46 = sshll.u32 [#allocation7], 4
      %s47 = int_to_ptr.vmem [resolvable:$true] %s46
      %52 = dma.hbm_to_vmem [thread:$0]  %s45, 512, %s47, [#allocation6], 128, 128, 8
    $region13: #{tpu_custom_call.1} parent=1 // pred_fallthru
      _
    // Predicated region
    $region14: #{tpu_custom_call.1} parent=1 // pred_check
      _
    $region15: #{tpu_custom_call.1} parent=1 // pred_check_branch
      %54 = sbr.rel (0) target = $region17
    $region16: #{tpu_custom_call.1} parent=1 // pred_region
      %56 = dma.done [#allocation3], 512
    $region17: #{tpu_custom_call.1} parent=1 // pred_fallthru
      _
    // Predicated region
    $region18: #{tpu_custom_call.1} parent=1 // pred_check
      _
    $region19: #{tpu_custom_call.1} parent=1 // pred_check_branch
      %58 = sbr.rel (0) target = $region21
    $region20: #{tpu_custom_call.1} parent=1 // pred_region
      %60 = dma.done [#allocation6], 512
    $region21: #{tpu_custom_call.1} parent=1 // pred_fallthru
      _
    // Predicated region
    $region22: #{tpu_custom_call.1} parent=1 // pred_check
      _
    $region23: #{tpu_custom_call.1} parent=1 // pred_check_branch
      %62 = sbr.rel (0) target = $region25
    $region24: #{tpu_custom_call.1} parent=1 // pred_region
      %64 = dma.done [#allocation6], 512
    $region25: #{tpu_custom_call.1} parent=1 // pred_fallthru
      _
    %v67 = vld [vmem:[#allocation2] sm:$0xff]
    %v68 = vld [vmem:[#allocation2 + $0x8] sm:$0xff]
    %v69 = vld [vmem:[#allocation2 + $0x10] sm:$0xff]
    %v70 = vld [vmem:[#allocation2 + $0x18] sm:$0xff]
    %v71 = vld [vmem:[#allocation5] sm:$0xff]
    %v72 = vld [vmem:[#allocation5 + $0x8] sm:$0xff]
    %v73 = vld [vmem:[#allocation5 + $0x10] sm:$0xff]
    %v74 = vld [vmem:[#allocation5 + $0x18] sm:$0xff]
    %vm75 = vcmp.ge.s32.totalorder %v67, 8
    %vm76 = vcmp.ge.s32.totalorder %v68, 8
    %vm77 = vcmp.ge.s32.totalorder %v69, 8
    %vm78 = vcmp.ge.s32.totalorder %v70, 8
    %vm79 = vcmp.ge.s32.totalorder %v71, 8
    %vm80 = vcmp.ge.s32.totalorder %v72, 8
    %vm81 = vcmp.ge.s32.totalorder %v73, 8
    %vm82 = vcmp.ge.s32.totalorder %v74, 8
    %vm83 = vmor %vm75, %vm79
    %vm84 = vmor %vm76, %vm80
    %vm85 = vmor %vm77, %vm81
    %vm86 = vmor %vm78, %vm82
    %v87 = vld [vmem:[#allocation7] sm:$0xff]
    %v88 = vld [vmem:[#allocation7 + $0x8] sm:$0xff]
    %v89 = vld [vmem:[#allocation7 + $0x10] sm:$0xff]
    %v90 = vld [vmem:[#allocation7 + $0x18] sm:$0xff]
    %v91 = vmul.f32 %v87, 0.4472136
    %v92 = vmul.f32 %v88, 0.4472136
    %v93 = vmul.f32 %v89, 0.4472136
    %v94 = vmul.f32 %v90, 0.4472136
    %v95 = vsel %vm83, %v91, 1.0
    %v96 = vsel %vm84, %v92, 1.0
    %v97 = vsel %vm85, %v93, 1.0
    %v98 = vsel %vm86, %v94, 1.0
    %99 = vst [vmem:[#allocation8] sm:$0xff] %v95
    %100 = vst [vmem:[#allocation8 + $0x8] sm:$0xff] %v96
    %101 = vst [vmem:[#allocation8 + $0x10] sm:$0xff] %v97
    %102 = vst [vmem:[#allocation8 + $0x18] sm:$0xff] %v98
    %vm103 = vmpackc.low %vm84, %vm83
    %vm104 = vmpackc.low %vm86, %vm85
    %v105 = vsel %vm103, 16711935, 0
    %v106 = vsel %vm104, 16711935, 0
    %v107 = vpack.c.b8 %v106, %v105
    %vm108 = vnez %v107
    %v109 = vsel %vm108, 16843009, 0
    %110 = vst [vmem:[#allocation9] sm:$0xff] %v109
    // Predicated region
    $region26: #{tpu_custom_call.1} parent=1 // pred_check
      _
    $region27: #{tpu_custom_call.1} parent=1 // pred_check_branch
      %112 = sbr.rel (0) target = $region29
    $region28: #{tpu_custom_call.1} parent=1 // pred_region
      %114 = vsyncadd [#allocation4], 0
      %s115 = sshll.u32 [#allocation8], 4
      %s116 = int_to_ptr.vmem [resolvable:$true] %s115
      %s117 = sshll.u32 %s3, 4
      %s118 = int_to_ptr.hbm [resolvable:$true] %s117
      %123 = dma.vmem_to_hbm [thread:$0]  %s116, 512, %s118, [#allocation4], 128, 128, 8
    $region29: #{tpu_custom_call.1} parent=1 // pred_fallthru
      _
    // Predicated region
    $region30: #{tpu_custom_call.1} parent=1 // pred_check
      _
    $region31: #{tpu_custom_call.1} parent=1 // pred_check_branch
      %125 = sbr.rel (0) target = $region33
    $region32: #{tpu_custom_call.1} parent=1 // pred_region
      %127 = vsyncadd [#allocation10], 0
      %s129 = sshll.u32 [#allocation9], 4
      %s130 = int_to_ptr.vmem [resolvable:$true] %s129
      %s131 = sshll.u32 %s4, 4
      %s132 = int_to_ptr.hbm [resolvable:$true] %s131
      %134 = dma.vmem_to_hbm [thread:$0]  %s130, 128, %s132, [#allocation10]
    $region33: #{tpu_custom_call.1} parent=1 // pred_fallthru
      _
    // Predicated region
    $region34: #{tpu_custom_call.1} parent=1 // pred_check
      _
    $region35: #{tpu_custom_call.1} parent=1 // pred_check_branch
      %136 = sbr.rel (0) target = $region37
    $region36: #{tpu_custom_call.1} parent=1 // pred_region
      %138 = dma.done [#allocation4], 512
    $region37: #{tpu_custom_call.1} parent=1 // pred_fallthru
      _
    // Predicated region
    $region38: #{tpu_custom_call.1} parent=1 // pred_check
      _
    $region39: #{tpu_custom_call.1} parent=1 // pred_check_branch
      %140 = sbr.rel (0) target = $region41
    $region40: #{tpu_custom_call.1} parent=1 // pred_region
      %142 = dma.done [#allocation10], 128
    $region41: #{tpu_custom_call.1} parent=1 // pred_fallthru
      _
    %143 = vsyncpa [#allocation3], 1
    %144 = vsyncpa [#allocation6], 1
    %145 = vsyncpa [#allocation4], 1
    %146 = vsyncpa [#allocation10], 1

</llo_original>
